<compile_context>
chip_gen: v7x
topology: tpu7x:2x2x1
jax: 0.10.0
libtpu: 0.0.40
codegen_flags: <defaults>
</compile_context>

<pallas_src>
import math
import functools

import jax
import jax.numpy as jnp
from jax.experimental import pallas as pl
from jax.experimental.pallas import tpu as pltpu


# ----------------------------------------------------------------------------
# Hardware / tiling helpers
# ----------------------------------------------------------------------------
@functools.lru_cache(maxsize=None)
def _vmem_limit_bytes():
    """Per-chip scoped-VMEM limit: ~3/4 of physical, capped at 96 MiB.
    v5e/v6e (128 MiB) -> 96 MiB; v7x (64 MiB) -> 48 MiB."""
    limit = 48 * 1024 * 1024  # safe fallback on every generation
    try:
        cap = getattr(pltpu.get_tpu_info(), "vmem_capacity_bytes", None)
        if cap:
            limit = min((int(cap) * 3) // 4, 96 * 1024 * 1024)
    except Exception:
        pass
    return int(limit)


def _sublane_align(dtype):
    """Minimum second-to-last block dim: 8 (f32), 16 (bf16), 32 (int8/fp8)."""
    return max(8, 32 // jnp.dtype(dtype).itemsize)


def _pick_tile(dim, target, align):
    """Aligned tile <= target (the full dim if it already fits)."""
    if dim <= target:
        return dim
    return max(align, (target // align) * align)


def _pick_divisor_tile(dim, target, align):
    """Largest aligned divisor of dim <= target (must divide exactly)."""
    if dim <= target:
        return dim
    t = (target // align) * align
    while t >= align:
        if dim % t == 0:
            return t
        t -= align
    return dim


# ----------------------------------------------------------------------------
# Linear:  y = x @ w.T + b   (w in torch (out, in) layout)
# ----------------------------------------------------------------------------
def _linear_kernel_single(x_ref, w_ref, b_ref, o_ref):
    # One K pass: no accumulator scratch, bias folded into the only store.
    acc = jax.lax.dot_general(
        x_ref[...], w_ref[...],
        dimension_numbers=(((1,), (1,)), ((), ())),
        preferred_element_type=jnp.float32)
    o_ref[...] = (acc + b_ref[...].astype(jnp.float32)).astype(o_ref.dtype)


def _linear_kernel_acc(x_ref, w_ref, b_ref, o_ref, acc_ref):
    # K-tiled path: accumulator is *initialized with the bias* at k == 0
    # (no separate zero + bias-add epilogue).
    @pl.when(pl.program_id(2) == 0)
    def _():
        acc_ref[...] = jnp.broadcast_to(
            b_ref[...].astype(jnp.float32), acc_ref.shape)

    acc_ref[...] += jax.lax.dot_general(
        x_ref[...], w_ref[...],
        dimension_numbers=(((1,), (1,)), ((), ())),
        preferred_element_type=jnp.float32)

    @pl.when(pl.program_id(2) == pl.num_programs(2) - 1)
    def _():
        o_ref[...] = acc_ref[...].astype(o_ref.dtype)


def pallas_linear(x, w, b, *, tm=512, tn=512, tk=2048):
    """y = x @ w.T + b.   x: (M, K),  w: (N, K) torch layout,  b: (N,)."""
    M, K = x.shape
    N, Kw = w.shape
    assert K == Kw and b.shape == (N,)
    isz = jnp.dtype(x.dtype).itemsize
    sub = _sublane_align(x.dtype)
    limit = _vmem_limit_bytes()
    budget = (limit * 3) // 5  # headroom for compiler scratch / pipelining

    tn = _pick_tile(N, tn, 128)  # lane-dense (>=128) output stores

    def vmem_need(tm_, tk_, with_acc):
        need = 2 * (tm_ + tn) * tk_ * isz + 2 * tm_ * tn * isz
        return need + (tm_ * tn * 4 if with_acc else 0)

    cparams2 = pltpu.CompilerParams(
        dimension_semantics=("parallel", "parallel"),
        vmem_limit_bytes=limit)

    # Preferred: single K pass (fewer grid steps, no RMW per K step).
    tm1 = _pick_tile(M, tm, sub)
    while vmem_need(tm1, K, False) > budget and tm1 > sub:
        tm1 = max(sub, (tm1 // 2 // sub) * sub)
    if vmem_need(tm1, K, False) <= budget:
        grid = (pl.cdiv(M, tm1), pl.cdiv(N, tn))
        return pl.pallas_call(
            _linear_kernel_single,
            grid=grid,
            in_specs=[pl.BlockSpec((tm1, K), lambda i, j: (i, 0)),
                      pl.BlockSpec((tn, K), lambda i, j: (j, 0)),
                      pl.BlockSpec((1, tn), lambda i, j: (0, j))],
            out_specs=pl.BlockSpec((tm1, tn), lambda i, j: (i, j)),
            out_shape=jax.ShapeDtypeStruct((M, N), x.dtype),
            compiler_params=cparams2,
        )(x, w, b.reshape(1, N))

    # Fallback: K-tiled with an f32 VMEM accumulator (tk must divide K).
    tm2 = _pick_tile(M, tm, sub)
    tk2 = _pick_divisor_tile(K, tk, 256 if isz < 4 else 128)
    while vmem_need(tm2, tk2, True) > budget and tm2 > sub:
        tm2 = max(sub, (tm2 // 2 // sub) * sub)
    grid = (pl.cdiv(M, tm2), pl.cdiv(N, tn), K // tk2)
    return pl.pallas_call(
        _linear_kernel_acc,
        grid=grid,
        in_specs=[pl.BlockSpec((tm2, tk2), lambda i, j, k: (i, k)),
                  pl.BlockSpec((tn, tk2), lambda i, j, k: (j, k)),
                  pl.BlockSpec((1, tn), lambda i, j, k: (0, j))],
        out_specs=pl.BlockSpec((tm2, tn), lambda i, j, k: (i, j)),
        out_shape=jax.ShapeDtypeStruct((M, N), x.dtype),
        scratch_shapes=[pltpu.VMEM((tm2, tn), jnp.float32)],
        compiler_params=pltpu.CompilerParams(
            dimension_semantics=("parallel", "parallel", "arbitrary"),
            vmem_limit_bytes=limit),
    )(x, w, b.reshape(1, N))


# ----------------------------------------------------------------------------
# Attention kernels: one (batch, head-block) per grid step.
# Refs are 2-D, lane-dense:
#   q_ref (L, hblk*Dh), k_ref/v_ref (S, hblk*Dh), o_ref (L, hblk*Dh).
# Per-head work is a static lane-slice loop (heads live in disjoint lane
# slabs of the same VMEM block).
# ----------------------------------------------------------------------------
def _attn_kernel(q_ref, k_ref, v_ref, o_ref, *, scale, dh):
    hblk = q_ref.shape[-1] // dh
    for h in range(hblk):
        sl = slice(h * dh, (h + 1) * dh)
        q = q_ref[:, sl] * scale                      # (L, Dh), input dtype
        k = k_ref[:, sl]                              # (S, Dh)
        v = v_ref[:, sl]                              # (S, Dh)
        s = jax.lax.dot_general(
            q, k, dimension_numbers=(((1,), (1,)), ((), ())),
            preferred_element_type=jnp.float32)       # (L, S) f32
        s = s - jnp.max(s, axis=-1, keepdims=True)
        p = jnp.exp(s)
        inv = pl.reciprocal(jnp.sum(p, axis=-1, keepdims=True), approx=True)
        o = jax.lax.dot_general(
            p.astype(v.dtype), v,
            dimension_numbers=(((1,), (0,)), ((), ())),
            preferred_element_type=jnp.float32)       # (L, Dh) f32
        # Deferred normalization: scale the small (L, Dh) accumulator.
        o_ref[:, sl] = (o * inv).astype(o_ref.dtype)


def _attn_kernel_w(q_ref, k_ref, v_ref, o_ref, w_ref, *, scale, dh):
    hblk = q_ref.shape[-1] // dh
    for h in range(hblk):
        sl = slice(h * dh, (h + 1) * dh)
        q = q_ref[:, sl] * scale
        k = k_ref[:, sl]
        v = v_ref[:, sl]
        s = jax.lax.dot_general(
            q, k, dimension_numbers=(((1,), (1,)), ((), ())),
            preferred_element_type=jnp.float32)
        s = s - jnp.max(s, axis=-1, keepdims=True)
        p = jnp.exp(s)
        inv = pl.reciprocal(jnp.sum(p, axis=-1, keepdims=True), approx=True)
        attn = p * inv                                # normalized (L, S) f32
        w_ref[h] = attn.astype(w_ref.dtype)
        o = jax.lax.dot_general(
            attn.astype(v.dtype), v,
            dimension_numbers=(((1,), (0,)), ((), ())),
            preferred_element_type=jnp.float32)
        o_ref[:, sl] = o.astype(o_ref.dtype)


def _pick_head_block(H, L, S, Dh, itemsize, *, need_weights, budget,
                     min_blocks=1):
    """Largest head block (divisor of H) fitting the VMEM budget, preferring
    lane-dense blocks (hblk*Dh multiple of 128) and keeping >= min_blocks
    head blocks so v7x's two TensorCores both get work."""
    def vmem(hb):
        per = 2 * (L + 2 * S) * hb * Dh * itemsize   # q,k,v blocks (x2 bufs)
        per += 2 * L * hb * Dh * itemsize            # output block (x2 bufs)
        if need_weights:
            per += 2 * hb * L * S * itemsize         # attn-weights block
        per += 4 * L * S * 4 + 2 * L * Dh * 4        # f32 per-head transients
        return per

    divisors = [d for d in range(1, H + 1)
                if H % d == 0 and H // d >= min_blocks]
    if not divisors:
        divisors = [1]
    fitting = [d for d in divisors if vmem(d) <= budget]
    if not fitting:
        return 1
    aligned = [d for d in fitting if (d * Dh) % 128 == 0]
    return max(aligned) if aligned else max(fitting)


def pallas_attention(q_arr, k_arr, v_arr, q_h0, k_h0, v_h0, *,
                     batch, num_heads, head_dim, need_weights):
    """Scaled dot-product attention reading q/k/v directly from (possibly
    packed) projection outputs.

    q_arr: (L, Cq) with row layout (L) and column layout (batch, heads, Dh);
    the q heads for batch b start at head index q_h0 within that batch's
    column slab.  Same for k_arr/v_arr (which may be the same array)."""
    L = q_arr.shape[0]
    S = k_arr.shape[0]
    B, H, Dh = batch, num_heads, head_dim
    dtype = q_arr.dtype
    limit = _vmem_limit_bytes()

    min_blocks = 1 if B >= 2 else min(2, H)   # keep >=2 programs for 2-TC v7x
    hblk = _pick_head_block(H, L, S, Dh, jnp.dtype(dtype).itemsize,
                            need_weights=need_weights,
                            budget=(limit * 3) // 5,
                            min_blocks=min_blocks)
    nHB = H // hblk
    cb = hblk * Dh                             # column-block width (elements)
    # TODO(synk): for very long S (esp. v7x, 64 MiB VMEM) switch to a KV-tiled
    # flash-style online softmax instead of the full (L, S) score tile.

    def col_map(arr, head0):
        heads_per_batch = arr.shape[1] // (B * Dh)
        assert heads_per_batch % hblk == 0 and head0 % hblk == 0
        per_b = heads_per_batch // hblk
        off = head0 // hblk
        return lambda b, j: (0, b * per_b + off + j)

    in_specs = [
        pl.BlockSpec((L, cb), col_map(q_arr, q_h0)),
        pl.BlockSpec((S, cb), col_map(k_arr, k_h0)),
        pl.BlockSpec((S, cb), col_map(v_arr, v_h0)),
    ]
    o_spec = pl.BlockSpec((L, cb), lambda b, j: (0, b * nHB + j))
    o_shape = jax.ShapeDtypeStruct((L, B * H * Dh), dtype)
    scale = 1.0 / math.sqrt(Dh)
    grid = (B, nHB)
    cparams = pltpu.CompilerParams(
        dimension_semantics=("parallel", "parallel"),
        vmem_limit_bytes=limit)

    if need_weights:
        out, w = pl.pallas_call(
            functools.partial(_attn_kernel_w, scale=scale, dh=Dh),
            grid=grid,
            in_specs=in_specs,
            out_specs=(o_spec,
                       pl.BlockSpec((hblk, L, S),
                                    lambda b, j: (b * nHB + j, 0, 0))),
            out_shape=(o_shape,
                       jax.ShapeDtypeStruct((B * H, L, S), dtype)),
            compiler_params=cparams,
        )(q_arr, k_arr, v_arr)
        return out, w

    out = pl.pallas_call(
        functools.partial(_attn_kernel, scale=scale, dh=Dh),
        grid=grid,
        in_specs=in_specs,
        out_specs=o_spec,
        out_shape=o_shape,
        compiler_params=cparams,
    )(q_arr, k_arr, v_arr)
    return out, None


# ----------------------------------------------------------------------------
# Module-level forward (glue in plain JAX — only free reshapes — hot path in
# Pallas)
# ----------------------------------------------------------------------------
def multihead_attention_forward(query, key, value, params, num_heads,
                                need_weights=True):
    """Equivalent of nn.MultiheadAttention.forward (no masks, dropout=0).
    Returns (attn_output (L,B,E), attn_output_weights (B*H,L,S) or None)."""
    L, B, E = query.shape
    S = key.shape[0]
    H = num_heads
    Dh = E // H
    assert Dh * H == E

    Wqkv = params["in_proj_weight"]   # (3E, E), torch layout
    bqkv = params["in_proj_bias"]     # (3E,)
    Wo = params["out_proj_weight"]    # (E, E), torch layout
    bo = params["out_proj_bias"]      # (E,)

    # Packed in-projection.  The attention kernel indexes the packed output
    # directly (column slabs per batch/head block), so no q/k/v slices and no
    # head-split transposes ever touch HBM.
    if query is key and key is value:
        qkv = pallas_linear(query.reshape(L * B, E), Wqkv, bqkv)   # (L*B, 3E)
        qkv = qkv.reshape(L, B * 3 * E)                            # free
        q_arr = k_arr = v_arr = qkv
        q_h0, k_h0, v_h0 = 0, H, 2 * H
    elif key is value:
        q_arr = pallas_linear(query.reshape(L * B, E), Wqkv[:E], bqkv[:E]
                              ).reshape(L, B * E)
        kv = pallas_linear(key.reshape(S * B, E), Wqkv[E:], bqkv[E:]
                           ).reshape(S, B * 2 * E)
        k_arr = v_arr = kv
        q_h0, k_h0, v_h0 = 0, 0, H
    else:
        q_arr = pallas_linear(query.reshape(L * B, E), Wqkv[:E], bqkv[:E]
                              ).reshape(L, B * E)
        k_arr = pallas_linear(key.reshape(S * B, E), Wqkv[E:2 * E],
                              bqkv[E:2 * E]).reshape(S, B * E)
        v_arr = pallas_linear(value.reshape(S * B, E), Wqkv[2 * E:],
                              bqkv[2 * E:]).reshape(S, B * E)
        q_h0 = k_h0 = v_h0 = 0

    # TODO(synk): attn_mask / key_padding_mask / dropout / add_bias_kv /
    # add_zero_attn paths not wired in (module defaults: None/None/0.0/False).
    attn_out, attn_weights = pallas_attention(
        q_arr, k_arr, v_arr, q_h0, k_h0, v_h0,
        batch=B, num_heads=H, head_dim=Dh, need_weights=need_weights)

    # attn_out is (L, B*E): reshaping to (L*B, E) is free (contiguous).
    out = pallas_linear(attn_out.reshape(L * B, E), Wo, bo).reshape(L, B, E)
    return out, attn_weights


def init_params(key, embed_dim):
    """Deterministic synthetic init mirroring _reset_parameters():
    xavier_uniform on in_proj_weight, zeros for biases, uniform out_proj."""
    E = embed_dim
    k1, k2 = jax.random.split(key)
    xav_bound = math.sqrt(6.0 / (3 * E + E))
    in_proj_weight = jax.random.uniform(
        k1, (3 * E, E), jnp.float32, -xav_bound, xav_bound)
    in_proj_bias = jnp.zeros((3 * E,), jnp.float32)
    out_bound = 1.0 / math.sqrt(E)
    out_proj_weight = jax.random.uniform(
        k2, (E, E), jnp.float32, -out_bound, out_bound)
    out_proj_bias = jnp.zeros((E,), jnp.float32)
    return {
        "in_proj_weight": in_proj_weight,
        "in_proj_bias": in_proj_bias,
        "out_proj_weight": out_proj_weight,
        "out_proj_bias": out_proj_bias,
    }


# ----------------------------------------------------------------------------
# Pure-JAX reference (for sanity checking the Pallas path)
# ----------------------------------------------------------------------------
def reference_mha(query, key, value, params, num_heads):
    L, B, E = query.shape
    S = key.shape[0]
    H = num_heads
    Dh = E // H
    W, b = params["in_proj_weight"], params["in_proj_bias"]
    q = query @ W[:E].T + b[:E]
    k = key @ W[E:2 * E].T + b[E:2 * E]
    v = value @ W[2 * E:].T + b[2 * E:]
    qh = q.reshape(L, B * H, Dh).transpose(1, 0, 2)
    kh = k.reshape(S, B * H, Dh).transpose(1, 0, 2)
    vh = v.reshape(S, B * H, Dh).transpose(1, 0, 2)
    s = jnp.einsum("bld,bsd->bls", qh, kh) / math.sqrt(Dh)
    w = jax.nn.softmax(s, axis=-1)
    o = jnp.einsum("bls,bsd->bld", w, vh)
    ao = o.transpose(1, 0, 2).reshape(L, B, E)
    out = ao @ params["out_proj_weight"].T + params["out_proj_bias"]
    return out, w


if __name__ == "__main__":
    embed_dim = 128
    num_heads = 4
    seq = 8
    src = 8
    bsz = 2

    root = jax.random.PRNGKey(0)
    kp, kx, km = jax.random.split(root, 3)
    params = init_params(kp, embed_dim)

    x = jax.random.normal(kx, (seq, bsz, embed_dim), jnp.float32)
    mem = jax.random.normal(km, (src, bsz, embed_dim), jnp.float32)

    # Self-attention (CLIP usage): exercises the fused packed-QKV path with
    # the attention kernel reading the packed projection output directly.
    out, w = multihead_attention_forward(x, x, x, params, num_heads)
    jax.block_until_ready(out)
    jax.block_until_ready(w)
    assert out.shape == (seq, bsz, embed_dim)
    assert w.shape == (bsz * num_heads, seq, seq)
    ref_out, ref_w = reference_mha(x, x, x, params, num_heads)
    assert jnp.allclose(out, ref_out, atol=2e-2, rtol=2e-2)
    assert jnp.allclose(w, ref_w, atol=2e-2, rtol=2e-2)

    # Cross-attention (shared k/v): exercises the fused-KV path.
    out2, w2 = multihead_attention_forward(x, mem, mem, params, num_heads)
    jax.block_until_ready(out2)
    ref_out2, _ = reference_mha(x, mem, mem, params, num_heads)
    assert jnp.allclose(out2, ref_out2, atol=2e-2, rtol=2e-2)

    # need_weights=False path (as used by CLIP): deferred softmax
    # normalization inside the attention kernel.
    out3, w3 = multihead_attention_forward(x, x, x, params, num_heads,
                                           need_weights=False)
    jax.block_until_ready(out3)
    assert w3 is None
    assert jnp.allclose(out3, ref_out, atol=2e-2, rtol=2e-2)

    print("KERNEL_OK")
</pallas_src>

<mosaic_0001>
module attributes {stable_mosaic.version = 11 : i64} {
  func.func @_linear_kernel_single(%arg0: i32, %arg1: i32, %arg2: memref<16x128xf32, #tpu.memory_space<vmem>>, %arg3: memref<384x128xf32, #tpu.memory_space<vmem>>, %arg4: memref<1x384xf32, #tpu.memory_space<vmem>>, %arg5: memref<16x384xf32, #tpu.memory_space<vmem>>) attributes {dimension_semantics = [#tpu.dimension_semantics<parallel>, #tpu.dimension_semantics<parallel>], iteration_bounds = array<i64: 1, 1>, scalar_prefetch = 0 : i64, scratch_operands = 0 : i64, tpu.core_type = #tpu.core_type<tc>, window_params = [{transform_indices = @transform_0, window_bounds = array<i64: 16, 128>}, {transform_indices = @transform_1, window_bounds = array<i64: 384, 128>}, {transform_indices = @transform_2, window_bounds = array<i64: 1, 384>}, {transform_indices = @transform_3, window_bounds = array<i64: 16, 384>}]} {
    %c0 = arith.constant 0 : index
    %c0_0 = arith.constant 0 : index
    %0 = vector.load %arg2[%c0, %c0_0] : memref<16x128xf32, #tpu.memory_space<vmem>>, vector<16x128xf32>
    %c0_1 = arith.constant 0 : index
    %c0_2 = arith.constant 0 : index
    %1 = vector.load %arg3[%c0_1, %c0_2] : memref<384x128xf32, #tpu.memory_space<vmem>>, vector<384x128xf32>
    %cst = arith.constant dense<0.000000e+00> : vector<16x384xf32>
    %2 = tpu.matmul %0, %1, %cst {dimension_numbers = #tpu.dot_dimension_numbers<[1], [1], [0], [0], [0, 0, 1, 0], [], []>} : vector<16x128xf32>, vector<384x128xf32>, vector<16x384xf32> -> vector<16x384xf32>
    %c0_3 = arith.constant 0 : index
    %c0_4 = arith.constant 0 : index
    %3 = vector.load %arg4[%c0_3, %c0_4] : memref<1x384xf32, #tpu.memory_space<vmem>>, vector<1x384xf32>
    %4 = vector.broadcast %3 : vector<1x384xf32> to vector<16x384xf32>
    %5 = arith.addf %2, %4 : vector<16x384xf32>
    %c0_5 = arith.constant 0 : index
    %c0_6 = arith.constant 0 : index
    %6 = vector.load %arg5[%c0_5, %c0_6] : memref<16x384xf32, #tpu.memory_space<vmem>>, vector<16x384xf32>
    tpu.vector_store %arg5[%c0_5, %c0_6], %5 {strides = array<i32>} : memref<16x384xf32, #tpu.memory_space<vmem>>, vector<16x384xf32>,
    return
  }
  func.func @transform_0(%arg0: i32, %arg1: i32) -> (i32, i32) {
    %c0_i32 = arith.constant 0 : i32
    %c0_i32_0 = arith.constant 0 : i32
    return %arg0, %c0_i32 : i32, i32
  }
  func.func @transform_1(%arg0: i32, %arg1: i32) -> (i32, i32) {
    %c0_i32 = arith.constant 0 : i32
    %c0_i32_0 = arith.constant 0 : i32
    return %arg1, %c0_i32 : i32, i32
  }
  func.func @transform_2(%arg0: i32, %arg1: i32) -> (i32, i32) {
    %c0_i32 = arith.constant 0 : i32
    %c0_i32_0 = arith.constant 0 : i32
    return %c0_i32, %arg1 : i32, i32
  }
  func.func @transform_3(%arg0: i32, %arg1: i32) -> (i32, i32) {
    %c0_i32 = arith.constant 0 : i32
    return %arg0, %arg1 : i32, i32
  }
}

</mosaic_0001>

<llo_original>
// kernel: tpu_custom_call.1
$region0: #{tpu_custom_call.1}
  #allocation0 [shape = 'u32[]', space=smem, size = 0x4, offset = 0x4, fixed_abs, tag = 'smem constant byte address 0x4 - core index']
  #allocation1 [shape = 'u32[144,128]{1,0:T(1,128)}', space=vmem, size = 0x12000, scoped, tag = 'internal scratch']
  %s0 = inlined_call_operand.hbm [shape: f32[16,128], index: 0, kind: input, shape index: {}]
  %s1 = inlined_call_operand.hbm [shape: f32[384,128], index: 1, kind: input, shape index: {}]
  %s2 = inlined_call_operand.vmem [shape: f32[1,384], index: 2, kind: input, shape index: {}]
  %s3 = inlined_call_operand.hbm [shape: f32[16,384], index: 3, kind: output, shape index: {}]
  %s4 = sld [smem:[#allocation0]]
  $region30: #{tpu_custom_call.1} parent=0
    _
  %s6 = ssub.s32 1, %s4
  %s7 = scalar_select 0, %s6, %s4
  $region1: #{tpu_custom_call.1} parent=0
    #allocation2 [shape = 'u8[8192]{0}', space=vmem, size = 0x2000, scoped, tag = 'input window, operand 0, single buffered']
    #allocation3 [shape = 's32[1]{0}', space=sflag, size = 0x4, scoped, tag = 'scoped memory for tpu_custom_call.1']
    #allocation4 [shape = 's32[1]{0}', space=sflag, size = 0x4, scoped, tag = 'scoped memory for tpu_custom_call.1']
    #allocation5 [shape = 'u8[196608]{0}', space=vmem, size = 0x30000, scoped, tag = 'input window, operand 1, single buffered']
    #allocation6 [shape = 's32[1]{0}', space=sflag, size = 0x4, scoped, tag = 'scoped memory for tpu_custom_call.1']
    #allocation7 [shape = 'u8[24576]{0}', space=vmem, size = 0x6000, scoped, tag = 'output window, operand 0, single buffered']
    %8 = vsyncpa [#allocation3], 0
    %9 = vsyncpa [#allocation6], 0
    %10 = vsyncpa [#allocation4], 0
    // Predicated region
    $region2: #{tpu_custom_call.1} parent=1 // pred_check
      _
    $region3: #{tpu_custom_call.1} parent=1 // pred_check_branch
      %12 = sbr.rel (0) target = $region5
    $region4: #{tpu_custom_call.1} parent=1 // pred_region
      %s14 = ssub.s32 256, 256
      %15 = vsyncadd [#allocation3], %s14
      %s16 = sshll.u32 [#allocation2], 4
      %s17 = int_to_ptr.vmem [resolvable:$true] %s16
      %22 = dma.hbm_to_vmem [thread:$0]  %s0, 256, %s17, [#allocation3], 128, 128, 8
    $region5: #{tpu_custom_call.1} parent=1 // pred_fallthru
      _
    // Predicated region
    $region6: #{tpu_custom_call.1} parent=1 // pred_check
      _
    $region7: #{tpu_custom_call.1} parent=1 // pred_check_branch
      %24 = sbr.rel (0) target = $region9
    $region8: #{tpu_custom_call.1} parent=1 // pred_region
      %s26 = ssub.s32 6144, 6144
      %27 = vsyncadd [#allocation6], %s26
      %s28 = sshll.u32 [#allocation5], 4
      %s29 = int_to_ptr.vmem [resolvable:$true] %s28
      %34 = dma.hbm_to_vmem [thread:$0]  %s1, 6144, %s29, [#allocation6], 128, 128, 8
    $region9: #{tpu_custom_call.1} parent=1 // pred_fallthru
      _
    // Predicated region
    $region10: #{tpu_custom_call.1} parent=1 // pred_check
      _
    $region11: #{tpu_custom_call.1} parent=1 // pred_check_branch
      %36 = sbr.rel (0) target = $region13
    $region12: #{tpu_custom_call.1} parent=1 // pred_region
      _
    $region13: #{tpu_custom_call.1} parent=1 // pred_fallthru
      _
    // Predicated region
    $region14: #{tpu_custom_call.1} parent=1 // pred_check
      _
    $region15: #{tpu_custom_call.1} parent=1 // pred_check_branch
      %38 = sbr.rel (0) target = $region17
    $region16: #{tpu_custom_call.1} parent=1 // pred_region
      %39 = dma.done [#allocation3], 256
    $region17: #{tpu_custom_call.1} parent=1 // pred_fallthru
      _
    // Predicated region
    $region18: #{tpu_custom_call.1} parent=1 // pred_check
      _
    $region19: #{tpu_custom_call.1} parent=1 // pred_check_branch
      %41 = sbr.rel (0) target = $region21
    $region20: #{tpu_custom_call.1} parent=1 // pred_region
      %42 = dma.done [#allocation6], 6144
    $region21: #{tpu_custom_call.1} parent=1 // pred_fallthru
      _
    %v43 = vld [vmem:[#allocation2] sm:$0xff]
    %v44 = vld [vmem:[#allocation2 + $0x8] sm:$0xff]
    %v45 = vld [vmem:[#allocation5] sm:$0xff]
    %v46 = vld [vmem:[#allocation5 + $0x8] sm:$0xff]
    %v47 = vld [vmem:[#allocation5 + $0x10] sm:$0xff]
    %v48 = vld [vmem:[#allocation5 + $0x18] sm:$0xff]
    %v49 = vld [vmem:[#allocation5 + $0x20] sm:$0xff]
    %v50 = vld [vmem:[#allocation5 + $0x28] sm:$0xff]
    %v51 = vld [vmem:[#allocation5 + $0x30] sm:$0xff]
    %v52 = vld [vmem:[#allocation5 + $0x38] sm:$0xff]
    %v53 = vld [vmem:[#allocation5 + $0x40] sm:$0xff]
    %v54 = vld [vmem:[#allocation5 + $0x48] sm:$0xff]
    %v55 = vld [vmem:[#allocation5 + $0x50] sm:$0xff]
    %v56 = vld [vmem:[#allocation5 + $0x58] sm:$0xff]
    %v57 = vld [vmem:[#allocation5 + $0x60] sm:$0xff]
    %v58 = vld [vmem:[#allocation5 + $0x68] sm:$0xff]
    %v59 = vld [vmem:[#allocation5 + $0x70] sm:$0xff]
    %v60 = vld [vmem:[#allocation5 + $0x78] sm:$0xff]
    %v61 = vld [vmem:[#allocation5 + $0x80] sm:$0xff]
    %v62 = vld [vmem:[#allocation5 + $0x88] sm:$0xff]
    %v63 = vld [vmem:[#allocation5 + $0x90] sm:$0xff]
    %v64 = vld [vmem:[#allocation5 + $0x98] sm:$0xff]
    %v65 = vld [vmem:[#allocation5 + $0xa0] sm:$0xff]
    %v66 = vld [vmem:[#allocation5 + $0xa8] sm:$0xff]
    %v67 = vld [vmem:[#allocation5 + $0xb0] sm:$0xff]
    %v68 = vld [vmem:[#allocation5 + $0xb8] sm:$0xff]
    %v69 = vld [vmem:[#allocation5 + $0xc0] sm:$0xff]
    %v70 = vld [vmem:[#allocation5 + $0xc8] sm:$0xff]
    %v71 = vld [vmem:[#allocation5 + $0xd0] sm:$0xff]
    %v72 = vld [vmem:[#allocation5 + $0xd8] sm:$0xff]
    %v73 = vld [vmem:[#allocation5 + $0xe0] sm:$0xff]
    %v74 = vld [vmem:[#allocation5 + $0xe8] sm:$0xff]
    %v75 = vld [vmem:[#allocation5 + $0xf0] sm:$0xff]
    %v76 = vld [vmem:[#allocation5 + $0xf8] sm:$0xff]
    %v77 = vld [vmem:[#allocation5 + $0x100] sm:$0xff]
    %v78 = vld [vmem:[#allocation5 + $0x108] sm:$0xff]
    %v79 = vld [vmem:[#allocation5 + $0x110] sm:$0xff]
    %v80 = vld [vmem:[#allocation5 + $0x118] sm:$0xff]
    %v81 = vld [vmem:[#allocation5 + $0x120] sm:$0xff]
    %v82 = vld [vmem:[#allocation5 + $0x128] sm:$0xff]
    %v83 = vld [vmem:[#allocation5 + $0x130] sm:$0xff]
    %v84 = vld [vmem:[#allocation5 + $0x138] sm:$0xff]
    %v85 = vld [vmem:[#allocation5 + $0x140] sm:$0xff]
    %v86 = vld [vmem:[#allocation5 + $0x148] sm:$0xff]
    %v87 = vld [vmem:[#allocation5 + $0x150] sm:$0xff]
    %v88 = vld [vmem:[#allocation5 + $0x158] sm:$0xff]
    %v89 = vld [vmem:[#allocation5 + $0x160] sm:$0xff]
    %v90 = vld [vmem:[#allocation5 + $0x168] sm:$0xff]
    %v91 = vld [vmem:[#allocation5 + $0x170] sm:$0xff]
    %v92 = vld [vmem:[#allocation5 + $0x178] sm:$0xff]
    %v93 = vld [vmem:[%s2] sm:$0x7]
    %v95 = vlaneseq
    %v96 = vshrl.u32 %v95, 7
    %v97 = vsub.s32 0, %v96
    %v98 = vrot.slane %v93, %v97
    %v99 = vlaneseq
    %v100 = vshrl.u32 %v99, 7
    %v101 = vsub.s32 1, %v100
    %v102 = vrot.slane %v93, %v101
    %v103 = vlaneseq
    %v104 = vshrl.u32 %v103, 7
    %v105 = vsub.s32 2, %v104
    %v106 = vrot.slane %v93, %v105
    %110 = vmatprep.subr.mxu0 0.0
    %111 = vmatpush1.xpose.msra.mxu0 %v45
    %112 = vmatprep.subr.mxu0 0.0
    %113 = vmatpush1.xpose.msra.mxu0 %v46
    %114 = vmatprep.subr.mxu0 0.0
    %115 = vmatpush1.xpose.msra.mxu0 %v47
    %116 = vmatprep.subr.mxu0 0.0
    %117 = vmatpush1.xpose.msra.mxu0 %v48
    %118 = vmatprep.subr.mxu0 0.0
    %119 = vmatpush1.xpose.msra.mxu0 %v49
    %120 = vmatprep.subr.mxu0 0.0
    %121 = vmatpush1.xpose.msra.mxu0 %v50
    %122 = vmatprep.subr.mxu0 0.0
    %123 = vmatpush1.xpose.msra.mxu0 %v51
    %124 = vmatprep.subr.mxu0 0.0
    %125 = vmatpush1.xpose.msra.mxu0 %v52
    %126 = vmatprep.subr.mxu0 0.0
    %127 = vmatpush1.xpose.msra.mxu0 %v53
    %128 = vmatprep.subr.mxu0 0.0
    %129 = vmatpush1.xpose.msra.mxu0 %v54
    %130 = vmatprep.subr.mxu0 0.0
    %131 = vmatpush1.xpose.msra.mxu0 %v55
    %132 = vmatprep.subr.mxu0 0.0
    %133 = vmatpush1.xpose.msra.mxu0 %v56
    %134 = vmatprep.subr.mxu0 0.0
    %135 = vmatpush1.xpose.msra.mxu0 %v57
    %136 = vmatprep.subr.mxu0 0.0
    %137 = vmatpush1.xpose.msra.mxu0 %v58
    %138 = vmatprep.subr.mxu0 0.0
    %139 = vmatpush1.xpose.msra.mxu0 %v59
    %140 = vmatprep.subr.mxu0 0.0
    %141 = vmatpush1.xpose.msra.mxu0 %v60
    %142 = vmatprep.subr.mxu0 0.0
    %143 = vmatpush1.xpose.msra.mxu0 %v61
    %144 = vmatprep.subr.mxu0 0.0
    %145 = vmatpush1.xpose.msra.mxu0 %v62
    %146 = vmatprep.subr.mxu0 0.0
    %147 = vmatpush1.xpose.msra.mxu0 %v63
    %148 = vmatprep.subr.mxu0 0.0
    %149 = vmatpush1.xpose.msra.mxu0 %v64
    %150 = vmatprep.subr.mxu0 0.0
    %151 = vmatpush1.xpose.msra.mxu0 %v65
    %152 = vmatprep.subr.mxu0 0.0
    %153 = vmatpush1.xpose.msra.mxu0 %v66
    %154 = vmatprep.subr.mxu0 0.0
    %155 = vmatpush1.xpose.msra.mxu0 %v67
    %156 = vmatprep.subr.mxu0 0.0
    %157 = vmatpush1.xpose.msra.mxu0 %v68
    %158 = vmatprep.subr.mxu0 0.0
    %159 = vmatpush1.xpose.msra.mxu0 %v69
    %160 = vmatprep.subr.mxu0 0.0
    %161 = vmatpush1.xpose.msra.mxu0 %v70
    %162 = vmatprep.subr.mxu0 0.0
    %163 = vmatpush1.xpose.msra.mxu0 %v71
    %164 = vmatprep.subr.mxu0 0.0
    %165 = vmatpush1.xpose.msra.mxu0 %v72
    %166 = vmatprep.subr.mxu0 0.0
    %167 = vmatpush1.xpose.msra.mxu0 %v73
    %168 = vmatprep.subr.mxu0 0.0
    %169 = vmatpush1.xpose.msra.mxu0 %v74
    %170 = vmatprep.subr.mxu0 0.0
    %171 = vmatpush1.xpose.msra.mxu0 %v75
    %172 = vmatprep.subr.mxu0 0.0
    %173 = vmatpush1.xpose.msra.mxu0 %v76
    %174 = vmatprep.mubr.f32.mxu0 0.0
    %175 = vmatmul.mubr.f32.gmra.mrb[0].mxu0 %v43
    %v176 = vpop.f32.mrb[0].mxu0
    %v177 = vadd.f32 %v98, %v176
    %v178 = vpop.f32.mrb[0].mxu0
    %v179 = vadd.f32 %v102, %v178
    %180 = vmatprep.mubr.f32.mxu0 0.0
    %181 = vmatmul.mubr.f32.gmra.mrb[0].mxu0 %v44
    %v182 = vpop.f32.mrb[0].mxu0
    %v183 = vadd.f32 %v98, %v182
    %v184 = vpop.f32.mrb[0].mxu0
    %v185 = vadd.f32 %v102, %v184
    %186 = vdwg.mxu0
    %187 = vmatprep.subr.mxu0 0.0
    %188 = vmatpush1.xpose.msra.mxu0 %v77
    %189 = vmatprep.subr.mxu0 0.0
    %190 = vmatpush1.xpose.msra.mxu0 %v78
    %191 = vmatprep.subr.mxu0 0.0
    %192 = vmatpush1.xpose.msra.mxu0 %v79
    %193 = vmatprep.subr.mxu0 0.0
    %194 = vmatpush1.xpose.msra.mxu0 %v80
    %195 = vmatprep.subr.mxu0 0.0
    %196 = vmatpush1.xpose.msra.mxu0 %v81
    %197 = vmatprep.subr.mxu0 0.0
    %198 = vmatpush1.xpose.msra.mxu0 %v82
    %199 = vmatprep.subr.mxu0 0.0
    %200 = vmatpush1.xpose.msra.mxu0 %v83
    %201 = vmatprep.subr.mxu0 0.0
    %202 = vmatpush1.xpose.msra.mxu0 %v84
    %203 = vmatprep.subr.mxu0 0.0
    %204 = vmatpush1.xpose.msra.mxu0 %v85
    %205 = vmatprep.subr.mxu0 0.0
    %206 = vmatpush1.xpose.msra.mxu0 %v86
    %207 = vmatprep.subr.mxu0 0.0
    %208 = vmatpush1.xpose.msra.mxu0 %v87
    %209 = vmatprep.subr.mxu0 0.0
    %210 = vmatpush1.xpose.msra.mxu0 %v88
    %211 = vmatprep.subr.mxu0 0.0
    %212 = vmatpush1.xpose.msra.mxu0 %v89
    %213 = vmatprep.subr.mxu0 0.0
    %214 = vmatpush1.xpose.msra.mxu0 %v90
    %215 = vmatprep.subr.mxu0 0.0
    %216 = vmatpush1.xpose.msra.mxu0 %v91
    %217 = vmatprep.subr.mxu0 0.0
    %218 = vmatpush1.xpose.msra.mxu0 %v92
    %219 = vmatprep.subr.mxu0 0.0
    %220 = vmatpush1.xpose.msra.mxu0 0.0
    %221 = vmatprep.subr.mxu0 0.0
    %222 = vmatpush1.xpose.msra.mxu0 0.0
    %223 = vmatprep.subr.mxu0 0.0
    %224 = vmatpush1.xpose.msra.mxu0 0.0
    %225 = vmatprep.subr.mxu0 0.0
    %226 = vmatpush1.xpose.msra.mxu0 0.0
    %227 = vmatprep.subr.mxu0 0.0
    %228 = vmatpush1.xpose.msra.mxu0 0.0
    %229 = vmatprep.subr.mxu0 0.0
    %230 = vmatpush1.xpose.msra.mxu0 0.0
    %231 = vmatprep.subr.mxu0 0.0
    %232 = vmatpush1.xpose.msra.mxu0 0.0
    %233 = vmatprep.subr.mxu0 0.0
    %234 = vmatpush1.xpose.msra.mxu0 0.0
    %235 = vmatprep.subr.mxu0 0.0
    %236 = vmatpush1.xpose.msra.mxu0 0.0
    %237 = vmatprep.subr.mxu0 0.0
    %238 = vmatpush1.xpose.msra.mxu0 0.0
    %239 = vmatprep.subr.mxu0 0.0
    %240 = vmatpush1.xpose.msra.mxu0 0.0
    %241 = vmatprep.subr.mxu0 0.0
    %242 = vmatpush1.xpose.msra.mxu0 0.0
    %243 = vmatprep.subr.mxu0 0.0
    %244 = vmatpush1.xpose.msra.mxu0 0.0
    %245 = vmatprep.subr.mxu0 0.0
    %246 = vmatpush1.xpose.msra.mxu0 0.0
    %247 = vmatprep.subr.mxu0 0.0
    %248 = vmatpush1.xpose.msra.mxu0 0.0
    %249 = vmatprep.subr.mxu0 0.0
    %250 = vmatpush1.xpose.msra.mxu0 0.0
    %251 = vmatprep.mubr.f32.mxu0 0.0
    %252 = vmatmul.mubr.f32.gmra.mrb[0].mxu0 %v43
    %v253 = vpop.f32.mrb[0].mxu0
    %v254 = vadd.f32 %v106, %v253
    %v255 = vpop.f32.mrb[0].mxu0
    %256 = vmatprep.mubr.f32.mxu0 0.0
    %257 = vmatmul.mubr.f32.gmra.mrb[0].mxu0 %v44
    %v258 = vpop.f32.mrb[0].mxu0
    %v259 = vadd.f32 %v106, %v258
    %v260 = vpop.f32.mrb[0].mxu0
    %261 = vdwg.mxu0
    %262 = vst [vmem:[#allocation7] sm:$0xff] %v177
    %263 = vst [vmem:[#allocation7 + $0x8] sm:$0xff] %v179
    %264 = vst [vmem:[#allocation7 + $0x10] sm:$0xff] %v254
    %265 = vst [vmem:[#allocation7 + $0x18] sm:$0xff] %v183
    %266 = vst [vmem:[#allocation7 + $0x20] sm:$0xff] %v185
    %267 = vst [vmem:[#allocation7 + $0x28] sm:$0xff] %v259
    // Predicated region
    $region22: #{tpu_custom_call.1} parent=1 // pred_check
      _
    $region23: #{tpu_custom_call.1} parent=1 // pred_check_branch
      %269 = sbr.rel (0) target = $region25
    $region24: #{tpu_custom_call.1} parent=1 // pred_region
      %s271 = ssub.s32 768, 768
      %272 = vsyncadd [#allocation4], %s271
      %s273 = sshll.u32 [#allocation7], 4
      %s274 = int_to_ptr.vmem [resolvable:$true] %s273
      %279 = dma.vmem_to_hbm [thread:$0]  %s274, 768, %s3, [#allocation4], 384, 384, 24
    $region25: #{tpu_custom_call.1} parent=1 // pred_fallthru
      _
    // Predicated region
    $region26: #{tpu_custom_call.1} parent=1 // pred_check
      _
    $region27: #{tpu_custom_call.1} parent=1 // pred_check_branch
      %281 = sbr.rel (0) target = $region29
    $region28: #{tpu_custom_call.1} parent=1 // pred_region
      %282 = dma.done [#allocation4], 768
    $region29: #{tpu_custom_call.1} parent=1 // pred_fallthru
      _
    %283 = vsyncpa [#allocation3], 1
    %284 = vsyncpa [#allocation6], 1
    %285 = vsyncpa [#allocation4], 1

</llo_original>
